<compile_context>
chip_gen: v5e
topology: v5e:2x2
jax: 0.10.0
libtpu: 0.0.40
codegen_flags: <defaults>
</compile_context>

<pallas_src>
import functools

import jax
import jax.numpy as jnp
from jax.experimental import pallas as pl
from jax.experimental.pallas import tpu as pltpu

EPS = 1e-5
LANE = 128
SUBLANE = 8
MAX_ROW_TILE = 256  # conservative across v5e (16 MiB scoped default) and v7x (64 MiB VMEM)


def _round_up(n, m):
    return (n + m - 1) // m * m


def _cdiv(a, b):
    return -(-a // b)


def _choose_row_tiling(batch):
    """Balanced row tiles, capped at MAX_ROW_TILE, >=2 even steps when batch is big."""
    if batch <= 2 * SUBLANE:
        return _round_up(batch, SUBLANE), 1
    n_tiles = max(2, _cdiv(batch, MAX_ROW_TILE))
    n_tiles += n_tiles % 2                      # even split across v7x's 2 TensorCores
    row_tile = _round_up(_cdiv(batch, n_tiles), SUBLANE)
    n_tiles = _cdiv(batch, row_tile)
    return row_tile, n_tiles


# ----------------------------- Pallas kernel ------------------------------- #

def _fused_mlp_kernel(x_ref, w1_ref, scale_ref, shift_ref,
                      w2_ref, b2_ref, w3_ref, b3_ref, o_ref,
                      *, num_tokens, in_p, h1_p):
    """x_ref: (rows, T*in_p) token-major; all feature dims padded to 128 lanes.

    Matmul operands are in w1_ref.dtype (bf16 fast path / f32 exact path) with
    f32 accumulation; BN + ReLU elementwise math is always f32.
    """
    mm_dtype = w1_ref.dtype
    z2 = None
    # Static unroll over tokens: realizes the Flatten as K-sliced matmul-accumulate,
    # so no in-kernel reshape / layout shuffle is needed.
    for t in range(num_tokens):
        xt = x_ref[:, t * in_p:(t + 1) * in_p]                          # (rows, in_p)
        h = jnp.dot(xt, w1_ref[...], preferred_element_type=jnp.float32)  # Linear 1 (bias folded)
        sc = scale_ref[:, t * h1_p:(t + 1) * h1_p]
        sh = shift_ref[:, t * h1_p:(t + 1) * h1_p]
        a = jnp.maximum(h * sc + sh, 0.0)                               # bias + BN(eval) + ReLU, f32
        part = jnp.dot(a.astype(mm_dtype),
                       w2_ref[t * h1_p:(t + 1) * h1_p, :],
                       preferred_element_type=jnp.float32)              # Linear 2 (K-slice)
        z2 = part if z2 is None else z2 + part
    a2 = jnp.maximum(z2 + b2_ref[...], 0.0)                             # bias hoisted + ReLU
    o_ref[...] = (jnp.dot(a2.astype(mm_dtype), w3_ref[...],
                          preferred_element_type=jnp.float32)
                  + b3_ref[...]).astype(o_ref.dtype)                    # Linear 3


# ------------------------------ wrapper (glue) ------------------------------ #

def make_mlp_forward(params, num_tokens=1, matmul_dtype=jnp.bfloat16):
    """Folds/pads parameters ONCE and returns a jitted forward(x) -> (B, out_dim)."""
    w1, b1, gamma, beta, rmean, rvar, w2, b2, w3, b3 = params
    in_dim, H1 = w1.shape
    H2 = w2.shape[1]
    out_dim = w3.shape[1]
    T = num_tokens
    f32 = jnp.float32
    md = jnp.dtype(matmul_dtype)

    # Lane-dense padded dims (lane-dense output -> unmasked vst stores).
    in_p = _round_up(in_dim, LANE)
    h1_p = _round_up(H1, LANE)
    h2_p = _round_up(H2, LANE)
    out_p = _round_up(out_dim, LANE)

    # ---- fold BatchNorm1d(eval) + Linear-1 bias into scale/shift (once) ----
    #   ((x@w1 + b1) - mean) * gamma/sqrt(var+eps) + beta
    #     == (x@w1) * scale + shift,   shift = beta + (b1 - mean) * scale
    scale = gamma * jax.lax.rsqrt(rvar + EPS)                 # (1, T*H1)
    shift = beta + (jnp.tile(b1, (1, T)) - rmean) * scale     # absorbs b1

    # ---- zero-pad everything to lane multiples (once, NOT per forward) -----
    w1p = jnp.zeros((in_p, h1_p), md).at[:in_dim, :H1].set(w1.astype(md))
    scale_p = (jnp.zeros((1, T, h1_p), f32).at[:, :, :H1]
               .set(scale.reshape(1, T, H1))).reshape(1, T * h1_p)
    shift_p = (jnp.zeros((1, T, h1_p), f32).at[:, :, :H1]
               .set(shift.reshape(1, T, H1))).reshape(1, T * h1_p)
    w2p = (jnp.zeros((T, h1_p, h2_p), md).at[:, :H1, :H2]
           .set(w2.reshape(T, H1, H2).astype(md))).reshape(T * h1_p, h2_p)
    b2p = jnp.zeros((1, h2_p), f32).at[:, :H2].set(b2)
    w3p = jnp.zeros((h2_p, out_p), md).at[:H2, :out_dim].set(w3.astype(md))
    b3p = jnp.zeros((1, out_p), f32).at[:, :out_dim].set(b3)

    weights = (w1p, scale_p, shift_p, w2p, b2p, w3p, b3p)
    weight_bytes = sum(int(a.size) * a.dtype.itemsize for a in weights)

    def _const_spec(shape):
        # Grid-invariant operand: same block every grid step; single-buffer it.
        idx = lambda i: (0,) * len(shape)
        try:
            return pl.BlockSpec(shape, idx, pipeline_mode=pl.Buffered(1))
        except TypeError:  # older jax without pipeline_mode: fall back to default
            return pl.BlockSpec(shape, idx)

    kernel = functools.partial(_fused_mlp_kernel,
                               num_tokens=T, in_p=in_p, h1_p=h1_p)

    @jax.jit
    def forward(x):
        B = x.shape[0]
        assert x.shape[1] == T and x.shape[2] == in_dim
        row_tile, n_tiles = _choose_row_tiling(B)
        Bp = row_tile * n_tiles

        # Pad + cast x; under jit this fuses into the producer (no extra HBM trip).
        xp = jnp.zeros((Bp, T, in_p), md).at[:B, :, :in_dim].set(x.astype(md))
        xp = xp.reshape(Bp, T * in_p)

        # Explicit VMEM budget from the actual block sizes (+25% headroom).
        io_bytes = 2 * row_tile * (T * in_p * md.itemsize + out_p * 4)  # double-buffered I/O
        act_bytes = 2 * row_tile * (h1_p + h2_p) * 4                    # f32 intermediates
        vmem_limit = int(1.25 * (io_bytes + act_bytes + 2 * weight_bytes)) + (1 << 20)
        vmem_limit = int(min(max(vmem_limit, 4 << 20), 64 << 20))

        out_padded = pl.pallas_call(
            kernel,
            out_shape=jax.ShapeDtypeStruct((Bp, out_p), f32),
            grid_spec=pltpu.PrefetchScalarGridSpec(
                num_scalar_prefetch=0,
                grid=(n_tiles,),
                in_specs=[
                    pl.BlockSpec((row_tile, T * in_p), lambda i: (i, 0)),  # x rows
                    _const_spec((in_p, h1_p)),       # w1
                    _const_spec((1, T * h1_p)),      # BN scale
                    _const_spec((1, T * h1_p)),      # BN shift (incl. b1)
                    _const_spec((T * h1_p, h2_p)),   # w2
                    _const_spec((1, h2_p)),          # b2
                    _const_spec((h2_p, out_p)),      # w3
                    _const_spec((1, out_p)),         # b3
                ],
                out_specs=pl.BlockSpec((row_tile, out_p), lambda i: (i, 0)),
            ),
            compiler_params=pltpu.CompilerParams(
                dimension_semantics=("parallel",),
                vmem_limit_bytes=vmem_limit),
        )(xp, *weights)

        return out_padded[:B, :out_dim]

    return forward


# --------------------------- reference (pure JAX) --------------------------- #

def mlp_reference(x, params):
    w1, b1, gamma, beta, rmean, rvar, w2, b2, w3, b3 = params
    B, T, in_dim = x.shape
    h1 = (x.reshape(B * T, in_dim) @ w1 + b1).reshape(B, -1)
    bn = (h1 - rmean) / jnp.sqrt(rvar + EPS) * gamma + beta
    a1 = jnp.maximum(bn, 0.0)
    a2 = jnp.maximum(a1 @ w2 + b2, 0.0)
    return a2 @ w3 + b3


# ------------------------------ param builders ------------------------------ #

def init_params(key, in_dim, hidden_dim1, hidden_dim2, out_dim, num_tokens):
    ks = jax.random.split(key, 10)
    flat_dim = hidden_dim1 * num_tokens

    def uinit(k, shape, fan_in):
        bound = 1.0 / jnp.sqrt(fan_in)
        return jax.random.uniform(k, shape, jnp.float32, -bound, bound)

    # Linear weights stored pre-transposed: (in, out). Biases stored as (1, out).
    w1 = uinit(ks[0], (in_dim, hidden_dim1), in_dim)
    b1 = uinit(ks[1], (1, hidden_dim1), in_dim)
    # BatchNorm1d(flat_dim) params / running stats (eval mode), shape (1, flat_dim)
    gamma = 1.0 + 0.1 * jax.random.normal(ks[2], (1, flat_dim), jnp.float32)
    beta = 0.1 * jax.random.normal(ks[3], (1, flat_dim), jnp.float32)
    rmean = 0.05 * jax.random.normal(ks[4], (1, flat_dim), jnp.float32)
    rvar = 1.0 + 0.1 * jax.random.uniform(ks[5], (1, flat_dim), jnp.float32)
    w2 = uinit(ks[6], (flat_dim, hidden_dim2), flat_dim)
    b2 = uinit(ks[7], (1, hidden_dim2), flat_dim)
    w3 = uinit(ks[8], (hidden_dim2, out_dim), hidden_dim2)
    b3 = uinit(ks[9], (1, out_dim), hidden_dim2)
    return (w1, b1, gamma, beta, rmean, rvar, w2, b2, w3, b3)


# ---------------------------------- main ------------------------------------ #

if __name__ == "__main__":
    key = jax.random.PRNGKey(0)

    # Case 1: default num_tokens=1 (matches the PyTorch module default).
    B, T = 8, 1
    in_dim, hidden_dim1, hidden_dim2, out_dim = 16, 32, 32, 8
    k_x, k_p, key = jax.random.split(key, 3)
    x = jax.random.normal(k_x, (B, T, in_dim), jnp.float32)
    params = init_params(k_p, in_dim, hidden_dim1, hidden_dim2, out_dim, T)
    ref = mlp_reference(x, params)

    fwd_bf16 = make_mlp_forward(params, num_tokens=T)           # bf16 MXU fast path
    out = jax.block_until_ready(fwd_bf16(x))
    assert out.shape == (B, out_dim)
    assert jnp.allclose(out, ref, atol=5e-2, rtol=5e-2), "mismatch vs reference (bf16, T=1)"

    fwd_f32 = make_mlp_forward(params, num_tokens=T, matmul_dtype=jnp.float32)
    out32 = jax.block_until_ready(fwd_f32(x))
    assert jnp.allclose(out32, ref, atol=1e-4, rtol=1e-4), "mismatch vs reference (f32, T=1)"

    # Case 2: num_tokens=2 exercises the Flatten / per-token path; odd batch
    # exercises sublane padding.
    B2, T2 = 5, 2
    k_x2, k_p2 = jax.random.split(key)
    x2 = jax.random.normal(k_x2, (B2, T2, in_dim), jnp.float32)
    params2 = init_params(k_p2, in_dim, hidden_dim1, hidden_dim2, out_dim, T2)
    ref2 = mlp_reference(x2, params2)

    fwd2_bf16 = make_mlp_forward(params2, num_tokens=T2)
    out2 = jax.block_until_ready(fwd2_bf16(x2))
    assert out2.shape == (B2, out_dim)
    assert jnp.allclose(out2, ref2, atol=5e-2, rtol=5e-2), "mismatch vs reference (bf16, T=2)"

    fwd2_f32 = make_mlp_forward(params2, num_tokens=T2, matmul_dtype=jnp.float32)
    out2_32 = jax.block_until_ready(fwd2_f32(x2))
    assert jnp.allclose(out2_32, ref2, atol=1e-4, rtol=1e-4), "mismatch vs reference (f32, T=2)"

    print("KERNEL_OK")
</pallas_src>

<mosaic_0001>
module attributes {stable_mosaic.version = 11 : i64} {
  func.func @_fused_mlp_kernel(%arg0: i32, %arg1: memref<8x128xbf16, #tpu.memory_space<vmem>>, %arg2: memref<128x128xbf16, #tpu.memory_space<vmem>>, %arg3: memref<1x128xf32, #tpu.memory_space<vmem>>, %arg4: memref<1x128xf32, #tpu.memory_space<vmem>>, %arg5: memref<128x128xbf16, #tpu.memory_space<vmem>>, %arg6: memref<1x128xf32, #tpu.memory_space<vmem>>, %arg7: memref<128x128xbf16, #tpu.memory_space<vmem>>, %arg8: memref<1x128xf32, #tpu.memory_space<vmem>>, %arg9: memref<8x128xf32, #tpu.memory_space<vmem>>) attributes {dimension_semantics = [#tpu.dimension_semantics<parallel>], iteration_bounds = array<i64: 1>, scalar_prefetch = 0 : i64, scratch_operands = 0 : i64, tpu.core_type = #tpu.core_type<tc>, window_params = [{transform_indices = @transform_0, window_bounds = array<i64: 8, 128>}, {pipeline_mode = #tpu.pipeline_mode<synchronous>, transform_indices = @transform_1, window_bounds = array<i64: 128, 128>}, {pipeline_mode = #tpu.pipeline_mode<synchronous>, transform_indices = @transform_2, window_bounds = array<i64: 1, 128>}, {pipeline_mode = #tpu.pipeline_mode<synchronous>, transform_indices = @transform_3, window_bounds = array<i64: 1, 128>}, {pipeline_mode = #tpu.pipeline_mode<synchronous>, transform_indices = @transform_4, window_bounds = array<i64: 128, 128>}, {pipeline_mode = #tpu.pipeline_mode<synchronous>, transform_indices = @transform_5, window_bounds = array<i64: 1, 128>}, {pipeline_mode = #tpu.pipeline_mode<synchronous>, transform_indices = @transform_6, window_bounds = array<i64: 128, 128>}, {pipeline_mode = #tpu.pipeline_mode<synchronous>, transform_indices = @transform_7, window_bounds = array<i64: 1, 128>}, {transform_indices = @transform_8, window_bounds = array<i64: 8, 128>}]} {
    %c0 = arith.constant 0 : index
    %c0_0 = arith.constant 0 : index
    %0 = vector.load %arg1[%c0, %c0_0] : memref<8x128xbf16, #tpu.memory_space<vmem>>, vector<8x128xbf16>
    %c0_1 = arith.constant 0 : index
    %c0_2 = arith.constant 0 : index
    %1 = vector.load %arg2[%c0_1, %c0_2] : memref<128x128xbf16, #tpu.memory_space<vmem>>, vector<128x128xbf16>
    %cst = arith.constant dense<0.000000e+00> : vector<8x128xf32>
    %2 = tpu.matmul %0, %1, %cst {dimension_numbers = #tpu.dot_dimension_numbers<[1], [0], [0], [1], [0, 0, 1, 1], [], []>} : vector<8x128xbf16>, vector<128x128xbf16>, vector<8x128xf32> -> vector<8x128xf32>
    %c0_3 = arith.constant 0 : index
    %c0_4 = arith.constant 0 : index
    %3 = vector.load %arg3[%c0_3, %c0_4] : memref<1x128xf32, #tpu.memory_space<vmem>>, vector<1x128xf32>
    %c0_5 = arith.constant 0 : index
    %c0_6 = arith.constant 0 : index
    %4 = vector.load %arg4[%c0_5, %c0_6] : memref<1x128xf32, #tpu.memory_space<vmem>>, vector<1x128xf32>
    %5 = vector.broadcast %3 : vector<1x128xf32> to vector<8x128xf32>
    %6 = arith.mulf %2, %5 : vector<8x128xf32>
    %7 = vector.broadcast %4 : vector<1x128xf32> to vector<8x128xf32>
    %8 = arith.addf %6, %7 : vector<8x128xf32>
    %cst_7 = arith.constant 0.000000e+00 : f32
    %9 = vector.broadcast %cst_7 : f32 to vector<8x128xf32>
    %10 = arith.maximumf %8, %9 : vector<8x128xf32>
    %11 = arith.truncf %10 : vector<8x128xf32> to vector<8x128xbf16>
    %c0_8 = arith.constant 0 : index
    %c0_9 = arith.constant 0 : index
    %12 = vector.load %arg5[%c0_8, %c0_9] : memref<128x128xbf16, #tpu.memory_space<vmem>>, vector<128x128xbf16>
    %cst_10 = arith.constant dense<0.000000e+00> : vector<8x128xf32>
    %13 = tpu.matmul %11, %12, %cst_10 {dimension_numbers = #tpu.dot_dimension_numbers<[1], [0], [0], [1], [0, 0, 1, 1], [], []>} : vector<8x128xbf16>, vector<128x128xbf16>, vector<8x128xf32> -> vector<8x128xf32>
    %c0_11 = arith.constant 0 : index
    %c0_12 = arith.constant 0 : index
    %14 = vector.load %arg6[%c0_11, %c0_12] : memref<1x128xf32, #tpu.memory_space<vmem>>, vector<1x128xf32>
    %15 = vector.broadcast %14 : vector<1x128xf32> to vector<8x128xf32>
    %16 = arith.addf %13, %15 : vector<8x128xf32>
    %cst_13 = arith.constant 0.000000e+00 : f32
    %17 = vector.broadcast %cst_13 : f32 to vector<8x128xf32>
    %18 = arith.maximumf %16, %17 : vector<8x128xf32>
    %19 = arith.truncf %18 : vector<8x128xf32> to vector<8x128xbf16>
    %c0_14 = arith.constant 0 : index
    %c0_15 = arith.constant 0 : index
    %20 = vector.load %arg7[%c0_14, %c0_15] : memref<128x128xbf16, #tpu.memory_space<vmem>>, vector<128x128xbf16>
    %cst_16 = arith.constant dense<0.000000e+00> : vector<8x128xf32>
    %21 = tpu.matmul %19, %20, %cst_16 {dimension_numbers = #tpu.dot_dimension_numbers<[1], [0], [0], [1], [0, 0, 1, 1], [], []>} : vector<8x128xbf16>, vector<128x128xbf16>, vector<8x128xf32> -> vector<8x128xf32>
    %c0_17 = arith.constant 0 : index
    %c0_18 = arith.constant 0 : index
    %22 = vector.load %arg8[%c0_17, %c0_18] : memref<1x128xf32, #tpu.memory_space<vmem>>, vector<1x128xf32>
    %23 = vector.broadcast %22 : vector<1x128xf32> to vector<8x128xf32>
    %24 = arith.addf %21, %23 : vector<8x128xf32>
    %c0_19 = arith.constant 0 : index
    %c0_20 = arith.constant 0 : index
    %25 = vector.load %arg9[%c0_19, %c0_20] : memref<8x128xf32, #tpu.memory_space<vmem>>, vector<8x128xf32>
    tpu.vector_store %arg9[%c0_19, %c0_20], %24 {strides = array<i32>} : memref<8x128xf32, #tpu.memory_space<vmem>>, vector<8x128xf32>,
    return
  }
  func.func @transform_0(%arg0: i32) -> (i32, i32) {
    %c0_i32 = arith.constant 0 : i32
    %c0_i32_0 = arith.constant 0 : i32
    return %arg0, %c0_i32 : i32, i32
  }
  func.func @transform_1(%arg0: i32) -> (i32, i32) {
    %c0_i32 = arith.constant 0 : i32
    %c0_i32_0 = arith.constant 0 : i32
    %c0_i32_1 = arith.constant 0 : i32
    return %c0_i32, %c0_i32_0 : i32, i32
  }
  func.func @transform_2(%arg0: i32) -> (i32, i32) {
    %c0_i32 = arith.constant 0 : i32
    %c0_i32_0 = arith.constant 0 : i32
    %c0_i32_1 = arith.constant 0 : i32
    return %c0_i32, %c0_i32_0 : i32, i32
  }
  func.func @transform_3(%arg0: i32) -> (i32, i32) {
    %c0_i32 = arith.constant 0 : i32
    %c0_i32_0 = arith.constant 0 : i32
    %c0_i32_1 = arith.constant 0 : i32
    return %c0_i32, %c0_i32_0 : i32, i32
  }
  func.func @transform_4(%arg0: i32) -> (i32, i32) {
    %c0_i32 = arith.constant 0 : i32
    %c0_i32_0 = arith.constant 0 : i32
    %c0_i32_1 = arith.constant 0 : i32
    return %c0_i32, %c0_i32_0 : i32, i32
  }
  func.func @transform_5(%arg0: i32) -> (i32, i32) {
    %c0_i32 = arith.constant 0 : i32
    %c0_i32_0 = arith.constant 0 : i32
    %c0_i32_1 = arith.constant 0 : i32
    return %c0_i32, %c0_i32_0 : i32, i32
  }
  func.func @transform_6(%arg0: i32) -> (i32, i32) {
    %c0_i32 = arith.constant 0 : i32
    %c0_i32_0 = arith.constant 0 : i32
    %c0_i32_1 = arith.constant 0 : i32
    return %c0_i32, %c0_i32_0 : i32, i32
  }
  func.func @transform_7(%arg0: i32) -> (i32, i32) {
    %c0_i32 = arith.constant 0 : i32
    %c0_i32_0 = arith.constant 0 : i32
    %c0_i32_1 = arith.constant 0 : i32
    return %c0_i32, %c0_i32_0 : i32, i32
  }
  func.func @transform_8(%arg0: i32) -> (i32, i32) {
    %c0_i32 = arith.constant 0 : i32
    %c0_i32_0 = arith.constant 0 : i32
    return %arg0, %c0_i32 : i32, i32
  }
}

</mosaic_0001>

<llo_original>
// kernel: forward.1
$region0: #{forward.1}
  #allocation0 [shape = 'u32[]', space=smem, size = 0x4, offset = 0x4, fixed_abs, tag = 'smem constant byte address 0x4 - core index']
  #allocation1 [shape = 'u32[72,128]{1,0:T(1,128)}', space=vmem, size = 0x9000, scoped, tag = 'internal scratch']
  %s0 = inlined_call_operand.vmem [shape: bf16[8,128], index: 0, kind: input, shape index: {}]
  %s1 = inlined_call_operand.hbm [shape: bf16[128,128], index: 1, kind: input, shape index: {}]
  %s2 = inlined_call_operand.vmem [shape: f32[1,128], index: 2, kind: input, shape index: {}]
  %s3 = inlined_call_operand.vmem [shape: f32[1,128], index: 3, kind: input, shape index: {}]
  %s4 = inlined_call_operand.hbm [shape: bf16[128,128], index: 4, kind: input, shape index: {}]
  %s5 = inlined_call_operand.vmem [shape: f32[1,128], index: 5, kind: input, shape index: {}]
  %s6 = inlined_call_operand.hbm [shape: bf16[128,128], index: 6, kind: input, shape index: {}]
  %s7 = inlined_call_operand.vmem [shape: f32[1,128], index: 7, kind: input, shape index: {}]
  %s8 = inlined_call_operand.hbm [shape: f32[8,128], index: 8, kind: output, shape index: {}]
  %s9 = sld [smem:[#allocation0]]
  $region54: #{forward.1} parent=0
    _
  %s11 = ssub.s32 1, %s9
  %s12 = scalar_select 0, %s11, %s9
  $region1: #{forward.1} parent=0
    #allocation2 [shape = 'u8[32768]{0}', space=vmem, size = 0x8000, scoped, tag = 'input window, operand 1, single buffered']
    #allocation3 [shape = 's32[1]{0}', space=sflag, size = 0x4, scoped, tag = 'scoped memory for forward.1']
    #allocation4 [shape = 's32[1]{0}', space=sflag, size = 0x4, scoped, tag = 'scoped memory for forward.1']
    #allocation5 [shape = 'u8[32768]{0}', space=vmem, size = 0x8000, scoped, tag = 'input window, operand 4, single buffered']
    #allocation6 [shape = 's32[1]{0}', space=sflag, size = 0x4, scoped, tag = 'scoped memory for forward.1']
    #allocation7 [shape = 'u8[32768]{0}', space=vmem, size = 0x8000, scoped, tag = 'input window, operand 6, single buffered']
    #allocation8 [shape = 'u8[4096]{0}', space=vmem, size = 0x1000, scoped, tag = 'output window, operand 0, single buffered']
    %13 = vsyncpa [#allocation3], 0
    %14 = vsyncpa [#allocation6], 0
    %15 = vsyncpa [#allocation4], 0
    // Predicated region
    $region2: #{forward.1} parent=1 // pred_check
      _
    $region3: #{forward.1} parent=1 // pred_check_branch
      %17 = sbr.rel (0) target = $region5
    $region4: #{forward.1} parent=1 // pred_region
      _
    $region5: #{forward.1} parent=1 // pred_fallthru
      _
    // Predicated region
    $region6: #{forward.1} parent=1 // pred_check
      _
    $region7: #{forward.1} parent=1 // pred_check_branch
      %19 = sbr.rel (0) target = $region9
    $region8: #{forward.1} parent=1 // pred_region
      %21 = vsyncadd [#allocation3], 0
      %s22 = sshll.u32 %s1, 4
      %s23 = int_to_ptr.hbm [resolvable:$true] %s22
      %s24 = sshll.u32 [#allocation2], 4
      %s25 = int_to_ptr.vmem [resolvable:$true] %s24
      %30 = dma.hbm_to_vmem [thread:$0]  %s23, 1024, %s25, [#allocation3], 64, 64, 4
    $region9: #{forward.1} parent=1 // pred_fallthru
      _
    // Predicated region
    $region10: #{forward.1} parent=1 // pred_check
      _
    $region11: #{forward.1} parent=1 // pred_check_branch
      %32 = sbr.rel (0) target = $region13
    $region12: #{forward.1} parent=1 // pred_region
      _
    $region13: #{forward.1} parent=1 // pred_fallthru
      _
    // Predicated region
    $region14: #{forward.1} parent=1 // pred_check
      _
    $region15: #{forward.1} parent=1 // pred_check_branch
      %34 = sbr.rel (0) target = $region17
    $region16: #{forward.1} parent=1 // pred_region
      _
    $region17: #{forward.1} parent=1 // pred_fallthru
      _
    // Predicated region
    $region18: #{forward.1} parent=1 // pred_check
      _
    $region19: #{forward.1} parent=1 // pred_check_branch
      %36 = sbr.rel (0) target = $region21
    $region20: #{forward.1} parent=1 // pred_region
      %38 = vsyncadd [#allocation6], 0
      %s39 = sshll.u32 %s4, 4
      %s40 = int_to_ptr.hbm [resolvable:$true] %s39
      %s41 = sshll.u32 [#allocation5], 4
      %s42 = int_to_ptr.vmem [resolvable:$true] %s41
      %47 = dma.hbm_to_vmem [thread:$0]  %s40, 1024, %s42, [#allocation6], 64, 64, 4
    $region21: #{forward.1} parent=1 // pred_fallthru
      _
    // Predicated region
    $region22: #{forward.1} parent=1 // pred_check
      _
    $region23: #{forward.1} parent=1 // pred_check_branch
      %49 = sbr.rel (0) target = $region25
    $region24: #{forward.1} parent=1 // pred_region
      _
    $region25: #{forward.1} parent=1 // pred_fallthru
      _
    // Predicated region
    $region26: #{forward.1} parent=1 // pred_check
      _
    $region27: #{forward.1} parent=1 // pred_check_branch
      %51 = sbr.rel (0) target = $region29
    $region28: #{forward.1} parent=1 // pred_region
      %53 = vsyncadd [#allocation6], 0
      %s54 = sshll.u32 %s6, 4
      %s55 = int_to_ptr.hbm [resolvable:$true] %s54
      %s56 = sshll.u32 [#allocation7], 4
      %s57 = int_to_ptr.vmem [resolvable:$true] %s56
      %62 = dma.hbm_to_vmem [thread:$0]  %s55, 1024, %s57, [#allocation6], 64, 64, 4
    $region29: #{forward.1} parent=1 // pred_fallthru
      _
    // Predicated region
    $region30: #{forward.1} parent=1 // pred_check
      _
    $region31: #{forward.1} parent=1 // pred_check_branch
      %64 = sbr.rel (0) target = $region33
    $region32: #{forward.1} parent=1 // pred_region
      _
    $region33: #{forward.1} parent=1 // pred_fallthru
      _
    // Predicated region
    $region34: #{forward.1} parent=1 // pred_check
      _
    $region35: #{forward.1} parent=1 // pred_check_branch
      %66 = sbr.rel (0) target = $region37
    $region36: #{forward.1} parent=1 // pred_region
      %68 = dma.done [#allocation3], 1024
    $region37: #{forward.1} parent=1 // pred_fallthru
      _
    // Predicated region
    $region38: #{forward.1} parent=1 // pred_check
      _
    $region39: #{forward.1} parent=1 // pred_check_branch
      %70 = sbr.rel (0) target = $region41
    $region40: #{forward.1} parent=1 // pred_region
      %72 = dma.done [#allocation6], 1024
    $region41: #{forward.1} parent=1 // pred_fallthru
      _
    // Predicated region
    $region42: #{forward.1} parent=1 // pred_check
      _
    $region43: #{forward.1} parent=1 // pred_check_branch
      %74 = sbr.rel (0) target = $region45
    $region44: #{forward.1} parent=1 // pred_region
      %76 = dma.done [#allocation6], 1024
    $region45: #{forward.1} parent=1 // pred_fallthru
      _
    %v77 = vld [vmem:[%s0] sm:$0xf]
    %v78 = vld [vmem:[#allocation2] sm:$0xf]
    %v79 = vld [vmem:[#allocation2 + $0x4] sm:$0xf]
    %v80 = vld [vmem:[#allocation2 + $0x8] sm:$0xf]
    %v81 = vld [vmem:[#allocation2 + $0xc] sm:$0xf]
    %v82 = vld [vmem:[#allocation2 + $0x10] sm:$0xf]
    %v83 = vld [vmem:[#allocation2 + $0x14] sm:$0xf]
    %v84 = vld [vmem:[#allocation2 + $0x18] sm:$0xf]
    %v85 = vld [vmem:[#allocation2 + $0x1c] sm:$0xf]
    %v86 = vld [vmem:[#allocation2 + $0x20] sm:$0xf]
    %v87 = vld [vmem:[#allocation2 + $0x24] sm:$0xf]
    %v88 = vld [vmem:[#allocation2 + $0x28] sm:$0xf]
    %v89 = vld [vmem:[#allocation2 + $0x2c] sm:$0xf]
    %v90 = vld [vmem:[#allocation2 + $0x30] sm:$0xf]
    %v91 = vld [vmem:[#allocation2 + $0x34] sm:$0xf]
    %v92 = vld [vmem:[#allocation2 + $0x38] sm:$0xf]
    %v93 = vld [vmem:[#allocation2 + $0x3c] sm:$0xf]
    %v110 = vunpack.c.l.b16 %v78
    %v111 = vunpack.c.l.b16 %v79
    %v112 = vunpack.c.l.b16 %v80
    %v113 = vunpack.c.l.b16 %v81
    %v114 = vunpack.c.l.b16 %v82
    %v115 = vunpack.c.l.b16 %v83
    %v116 = vunpack.c.l.b16 %v84
    %v117 = vunpack.c.l.b16 %v85
    %v118 = vunpack.c.l.b16 %v86
    %v119 = vunpack.c.l.b16 %v87
    %v120 = vunpack.c.l.b16 %v88
    %v121 = vunpack.c.l.b16 %v89
    %v122 = vunpack.c.l.b16 %v90
    %v123 = vunpack.c.l.b16 %v91
    %v124 = vunpack.c.l.b16 %v92
    %v125 = vunpack.c.l.b16 %v93
    %v126 = vpack.c.b16 %v111, %v110
    %v127 = vpack.c.b16 %v113, %v112
    %v128 = vpack.c.b16 %v115, %v114
    %v129 = vpack.c.b16 %v117, %v116
    %v130 = vpack.c.b16 %v119, %v118
    %v131 = vpack.c.b16 %v121, %v120
    %v132 = vpack.c.b16 %v123, %v122
    %v133 = vpack.c.b16 %v125, %v124
    %142 = vmatpush.bf16.msra.mxu0 %v133
    %143 = vmatpush.bf16.msra.mxu0 %v132
    %144 = vmatpush.bf16.msra.mxu0 %v131
    %145 = vmatpush.bf16.msra.mxu0 %v130
    %146 = vmatpush.bf16.msra.mxu0 %v129
    %147 = vmatpush.bf16.msra.mxu0 %v128
    %148 = vmatpush.bf16.msra.mxu0 %v127
    %149 = vmatpush.bf16.msra.mxu0 %v126
    %150 = vmatmul.bf16.gmra.mxu0 %v77
    %v151 = vpop.f32.mrf.mxu0
    %v152 = vadd.f32 0.0, %v151
    %v153 = vpop.f32.mrf.mxu0
    %154 = vdwg.mxu0
    %v155 = vld [vmem:[%s2] sm:$0x1]
    %v156 = vld [vmem:[%s3] sm:$0x1]
    %v158 = vperm.slane %v155, 0
    %v160 = vmul.f32 %v152, %v158
    %v162 = vperm.slane %v156, 0
    %v164 = vadd.f32 %v160, %v162
    %v165 = vmax.f32 %v164, 0.0
    %v166 = vpack.c.bf16 %v165, %v165
    %v167 = vld [vmem:[#allocation5] sm:$0xf]
    %v168 = vld [vmem:[#allocation5 + $0x4] sm:$0xf]
    %v169 = vld [vmem:[#allocation5 + $0x8] sm:$0xf]
    %v170 = vld [vmem:[#allocation5 + $0xc] sm:$0xf]
    %v171 = vld [vmem:[#allocation5 + $0x10] sm:$0xf]
    %v172 = vld [vmem:[#allocation5 + $0x14] sm:$0xf]
    %v173 = vld [vmem:[#allocation5 + $0x18] sm:$0xf]
    %v174 = vld [vmem:[#allocation5 + $0x1c] sm:$0xf]
    %v175 = vld [vmem:[#allocation5 + $0x20] sm:$0xf]
    %v176 = vld [vmem:[#allocation5 + $0x24] sm:$0xf]
    %v177 = vld [vmem:[#allocation5 + $0x28] sm:$0xf]
    %v178 = vld [vmem:[#allocation5 + $0x2c] sm:$0xf]
    %v179 = vld [vmem:[#allocation5 + $0x30] sm:$0xf]
    %v180 = vld [vmem:[#allocation5 + $0x34] sm:$0xf]
    %v181 = vld [vmem:[#allocation5 + $0x38] sm:$0xf]
    %v182 = vld [vmem:[#allocation5 + $0x3c] sm:$0xf]
    %v183 = vld [vmem:[%s5] sm:$0x1]
    %v185 = vperm.slane %v183, 0
    %v203 = vunpack.c.l.b16 %v167
    %v204 = vunpack.c.l.b16 %v168
    %v205 = vunpack.c.l.b16 %v169
    %v206 = vunpack.c.l.b16 %v170
    %v207 = vunpack.c.l.b16 %v171
    %v208 = vunpack.c.l.b16 %v172
    %v209 = vunpack.c.l.b16 %v173
    %v210 = vunpack.c.l.b16 %v174
    %v211 = vunpack.c.l.b16 %v175
    %v212 = vunpack.c.l.b16 %v176
    %v213 = vunpack.c.l.b16 %v177
    %v214 = vunpack.c.l.b16 %v178
    %v215 = vunpack.c.l.b16 %v179
    %v216 = vunpack.c.l.b16 %v180
    %v217 = vunpack.c.l.b16 %v181
    %v218 = vunpack.c.l.b16 %v182
    %v219 = vpack.c.b16 %v204, %v203
    %v220 = vpack.c.b16 %v206, %v205
    %v221 = vpack.c.b16 %v208, %v207
    %v222 = vpack.c.b16 %v210, %v209
    %v223 = vpack.c.b16 %v212, %v211
    %v224 = vpack.c.b16 %v214, %v213
    %v225 = vpack.c.b16 %v216, %v215
    %v226 = vpack.c.b16 %v218, %v217
    %235 = vmatpush.bf16.msra.mxu0 %v226
    %236 = vmatpush.bf16.msra.mxu0 %v225
    %237 = vmatpush.bf16.msra.mxu0 %v224
    %238 = vmatpush.bf16.msra.mxu0 %v223
    %239 = vmatpush.bf16.msra.mxu0 %v222
    %240 = vmatpush.bf16.msra.mxu0 %v221
    %241 = vmatpush.bf16.msra.mxu0 %v220
    %242 = vmatpush.bf16.msra.mxu0 %v219
    %243 = vmatmul.bf16.gmra.mxu0 %v166
    %v244 = vpop.f32.mrf.mxu0
    %v245 = vadd.f32 %v185, %v244
    %v246 = vpop.f32.mrf.mxu0
    %247 = vdwg.mxu0
    %v248 = vmax.f32 %v245, 0.0
    %v249 = vpack.c.bf16 %v248, %v248
    %v250 = vld [vmem:[#allocation7] sm:$0xf]
    %v251 = vld [vmem:[#allocation7 + $0x4] sm:$0xf]
    %v252 = vld [vmem:[#allocation7 + $0x8] sm:$0xf]
    %v253 = vld [vmem:[#allocation7 + $0xc] sm:$0xf]
    %v254 = vld [vmem:[#allocation7 + $0x10] sm:$0xf]
    %v255 = vld [vmem:[#allocation7 + $0x14] sm:$0xf]
    %v256 = vld [vmem:[#allocation7 + $0x18] sm:$0xf]
    %v257 = vld [vmem:[#allocation7 + $0x1c] sm:$0xf]
    %v258 = vld [vmem:[#allocation7 + $0x20] sm:$0xf]
    %v259 = vld [vmem:[#allocation7 + $0x24] sm:$0xf]
    %v260 = vld [vmem:[#allocation7 + $0x28] sm:$0xf]
    %v261 = vld [vmem:[#allocation7 + $0x2c] sm:$0xf]
    %v262 = vld [vmem:[#allocation7 + $0x30] sm:$0xf]
    %v263 = vld [vmem:[#allocation7 + $0x34] sm:$0xf]
    %v264 = vld [vmem:[#allocation7 + $0x38] sm:$0xf]
    %v265 = vld [vmem:[#allocation7 + $0x3c] sm:$0xf]
    %v266 = vld [vmem:[%s7] sm:$0x1]
    %v268 = vperm.slane %v266, 0
    %v286 = vunpack.c.l.b16 %v250
    %v287 = vunpack.c.l.b16 %v251
    %v288 = vunpack.c.l.b16 %v252
    %v289 = vunpack.c.l.b16 %v253
    %v290 = vunpack.c.l.b16 %v254
    %v291 = vunpack.c.l.b16 %v255
    %v292 = vunpack.c.l.b16 %v256
    %v293 = vunpack.c.l.b16 %v257
    %v294 = vunpack.c.l.b16 %v258
    %v295 = vunpack.c.l.b16 %v259
    %v296 = vunpack.c.l.b16 %v260
    %v297 = vunpack.c.l.b16 %v261
    %v298 = vunpack.c.l.b16 %v262
    %v299 = vunpack.c.l.b16 %v263
    %v300 = vunpack.c.l.b16 %v264
    %v301 = vunpack.c.l.b16 %v265
    %v302 = vpack.c.b16 %v287, %v286
    %v303 = vpack.c.b16 %v289, %v288
    %v304 = vpack.c.b16 %v291, %v290
    %v305 = vpack.c.b16 %v293, %v292
    %v306 = vpack.c.b16 %v295, %v294
    %v307 = vpack.c.b16 %v297, %v296
    %v308 = vpack.c.b16 %v299, %v298
    %v309 = vpack.c.b16 %v301, %v300
    %318 = vmatpush.bf16.msra.mxu0 %v309
    %319 = vmatpush.bf16.msra.mxu0 %v308
    %320 = vmatpush.bf16.msra.mxu0 %v307
    %321 = vmatpush.bf16.msra.mxu0 %v306
    %322 = vmatpush.bf16.msra.mxu0 %v305
    %323 = vmatpush.bf16.msra.mxu0 %v304
    %324 = vmatpush.bf16.msra.mxu0 %v303
    %325 = vmatpush.bf16.msra.mxu0 %v302
    %326 = vmatmul.bf16.gmra.mxu0 %v249
    %v327 = vpop.f32.mrf.mxu0
    %v328 = vadd.f32 %v268, %v327
    %v329 = vpop.f32.mrf.mxu0
    %330 = vdwg.mxu0
    %331 = vst [vmem:[#allocation8] sm:$0xff] %v328
    // Predicated region
    $region46: #{forward.1} parent=1 // pred_check
      _
    $region47: #{forward.1} parent=1 // pred_check_branch
      %333 = sbr.rel (0) target = $region49
    $region48: #{forward.1} parent=1 // pred_region
      %335 = vsyncadd [#allocation4], 0
      %s337 = sshll.u32 [#allocation8], 4
      %s338 = int_to_ptr.vmem [resolvable:$true] %s337
      %s339 = sshll.u32 %s8, 4
      %s340 = int_to_ptr.hbm [resolvable:$true] %s339
      %342 = dma.vmem_to_hbm [thread:$0]  %s338, 128, %s340, [#allocation4]
    $region49: #{forward.1} parent=1 // pred_fallthru
      _
    // Predicated region
    $region50: #{forward.1} parent=1 // pred_check
      _
    $region51: #{forward.1} parent=1 // pred_check_branch
      %344 = sbr.rel (0) target = $region53
    $region52: #{forward.1} parent=1 // pred_region
      %346 = dma.done [#allocation4], 128
    $region53: #{forward.1} parent=1 // pred_fallthru
      _
    %347 = vsyncpa [#allocation3], 1
    %348 = vsyncpa [#allocation6], 1
    %349 = vsyncpa [#allocation4], 1

</llo_original>
